<compile_context>
chip_gen: v7x
topology: tpu7x:2x2x1
jax: 0.10.0
libtpu: 0.0.40
codegen_flags: <defaults>
</compile_context>

<pallas_src>
import functools

import jax
import jax.numpy as jnp
from jax import lax
from jax.experimental import pallas as pl
from jax.experimental.pallas import tpu as pltpu


# ----------------------------------------------------------------------------
# Fused kernel: qkv projection + per-head attention + output projection
# ----------------------------------------------------------------------------
def _fused_attention_kernel(x_ref, w_qkv_ref, w_out_ref, b_out_ref, o_ref, *,
                            heads, dim_head, scale, matmul_dtype):
    inner = heads * dim_head
    x = x_ref[...]                       # (N, DIM)   (batch dim squeezed away)
    w_qkv = w_qkv_ref[...]               # (DIM, 3*inner)
    w_out = w_out_ref[...]               # (inner, DIM)
    b_out = b_out_ref[...]               # (1, DIM)

    # --- qkv projection: one MXU matmul, f32 accumulation ---
    qkv = jnp.dot(x.astype(matmul_dtype), w_qkv.astype(matmul_dtype),
                  preferred_element_type=jnp.float32)        # (N, 3*inner) f32

    # Fold the softmax scale into q once (N*inner elements, not N*N).
    q = qkv[:, 0 * inner:1 * inner] * scale
    k = qkv[:, 1 * inner:2 * inner]
    v = qkv[:, 2 * inner:3 * inner]

    # --- per-head attention (static unroll; lane slices, no transposes) ---
    head_outs = []
    for h in range(heads):
        lo = h * dim_head
        hi = lo + dim_head
        q_h = q[:, lo:hi].astype(matmul_dtype)               # (N, D)
        k_h = k[:, lo:hi].astype(matmul_dtype)               # (N, D)
        v_h = v[:, lo:hi]                                    # (N, D) f32

        # q @ k^T via dot_general contracting D on both operands: the MXU
        # consumes the transposed contraction natively, no k.T materialized.
        dots = lax.dot_general(q_h, k_h,
                               dimension_numbers=(((1,), (1,)), ((), ())),
                               preferred_element_type=jnp.float32)   # (N, N)

        # Numerically stable softmax, kept in f32.  The denominator is applied
        # after the PV matmul on the (N, D) result instead of the (N, N) probs.
        m = jnp.max(dots, axis=-1, keepdims=True)
        p = jnp.exp(dots - m)
        l = jnp.sum(p, axis=-1, keepdims=True)
        o_h = jnp.dot(p.astype(matmul_dtype), v_h.astype(matmul_dtype),
                      preferred_element_type=jnp.float32)    # (N, D)
        o_h = o_h * pl.reciprocal(l, approx=True)            # EUP slot
        head_outs.append(o_h)

    out = jnp.concatenate(head_outs, axis=-1)                # (N, inner)

    # --- output projection + bias (Dropout(0.0) is identity at inference) ---
    y = jnp.dot(out.astype(matmul_dtype), w_out.astype(matmul_dtype),
                preferred_element_type=jnp.float32) + b_out
    o_ref[...] = y.astype(o_ref.dtype)                       # lane-dense (N, DIM)


# ----------------------------------------------------------------------------
# Wrapper
# ----------------------------------------------------------------------------
def attention_forward(x, params, heads, *, matmul_dtype=jnp.float32):
    """x: (B, N, DIM). params: w_qkv (DIM, 3*inner), w_out (inner, DIM), b_out (1, DIM)."""
    b, n, dim = x.shape
    w_qkv = params["w_qkv"]
    w_out = params["w_out"]
    b_out = params["b_out"]
    inner_dim = w_out.shape[0]
    assert inner_dim % heads == 0
    dim_head = inner_dim // heads
    scale = float(dim_head) ** (-0.5)

    kernel = functools.partial(
        _fused_attention_kernel,
        heads=heads, dim_head=dim_head, scale=scale, matmul_dtype=matmul_dtype)

    return pl.pallas_call(
        kernel,
        out_shape=jax.ShapeDtypeStruct((b, n, dim), x.dtype),
        grid=(b,),
        in_specs=[
            pl.BlockSpec((pl.Squeezed(), n, dim), lambda i: (i, 0, 0)),
            pl.BlockSpec(w_qkv.shape, lambda i: (0, 0)),
            pl.BlockSpec(w_out.shape, lambda i: (0, 0)),
            pl.BlockSpec(b_out.shape, lambda i: (0, 0)),
        ],
        out_specs=pl.BlockSpec((pl.Squeezed(), n, dim), lambda i: (i, 0, 0)),
        compiler_params=pltpu.CompilerParams(
            # Batch axis is independent -> shards across the 2 TCs on v7x;
            # harmless on v5e/v6e (1 TC).
            dimension_semantics=("parallel",),
        ),
    )(x, w_qkv, w_out, b_out)


# ----------------------------------------------------------------------------
# Deterministic parameter init + pure-JAX reference + demo
# ----------------------------------------------------------------------------
def init_params(key, dim, heads, dim_head):
    inner_dim = heads * dim_head
    k1, k2, k3 = jax.random.split(key, 3)
    # Stored already-transposed relative to torch (so forward is x @ W).
    w_qkv = jax.random.normal(k1, (dim, inner_dim * 3), jnp.float32) * 0.02
    w_out = jax.random.normal(k2, (inner_dim, dim), jnp.float32) * 0.02
    b_out = jax.random.normal(k3, (1, dim), jnp.float32) * 0.02
    return {"w_qkv": w_qkv, "w_out": w_out, "b_out": b_out}


def ref_forward(x, params, heads):
    b, n, dim = x.shape
    inner = params["w_out"].shape[0]
    dh = inner // heads
    scale = float(dh) ** (-0.5)
    qkv = x @ params["w_qkv"]
    q, k, v = jnp.split(qkv, 3, axis=-1)

    def to_heads(t):
        return t.reshape(b, n, heads, dh).transpose(0, 2, 1, 3)

    q, k, v = map(to_heads, (q, k, v))
    dots = jnp.einsum("bhid,bhjd->bhij", q, k) * scale
    attn = jax.nn.softmax(dots, axis=-1)
    out = jnp.einsum("bhij,bhjd->bhid", attn, v)
    out = out.transpose(0, 2, 1, 3).reshape(b, n, inner)
    return out @ params["w_out"] + params["b_out"][0]


if __name__ == "__main__":
    # Small shapes consistent with the module: batch=2, seq=8, dim=32,
    # heads=4, dim_head=16  ->  inner_dim=64.
    B, N, DIM = 2, 8, 32
    HEADS, DIM_HEAD = 4, 16

    key = jax.random.PRNGKey(0)
    kx, kp = jax.random.split(key)
    x = jax.random.normal(kx, (B, N, DIM), jnp.float32)
    params = init_params(kp, DIM, HEADS, DIM_HEAD)

    # f32-operand path (faithful to the PyTorch module's precision).
    y = attention_forward(x, params, HEADS)
    y = jax.block_until_ready(y)

    y_ref = ref_forward(x, params, HEADS)
    assert y.shape == (B, N, DIM)
    assert jnp.allclose(y, y_ref, atol=2e-3, rtol=2e-3), "f32 path mismatch vs reference"

    # bf16-operand MXU path (per perf review); softmax stays f32, accumulation f32.
    y_bf16 = attention_forward(x, params, HEADS, matmul_dtype=jnp.bfloat16)
    y_bf16 = jax.block_until_ready(y_bf16)
    assert jnp.allclose(y_bf16, y_ref, atol=5e-2, rtol=5e-2), "bf16 path mismatch vs reference"

    print("KERNEL_OK")
</pallas_src>

<mosaic_0001>
module attributes {stable_mosaic.version = 11 : i64} {
  func.func @_fused_attention_kernel(%arg0: i32, %arg1: memref<1x8x32xf32, #tpu.memory_space<vmem>>, %arg2: memref<32x192xf32, #tpu.memory_space<vmem>>, %arg3: memref<64x32xf32, #tpu.memory_space<vmem>>, %arg4: memref<1x32xf32, #tpu.memory_space<vmem>>, %arg5: memref<1x8x32xf32, #tpu.memory_space<vmem>>) attributes {dimension_semantics = [#tpu.dimension_semantics<parallel>], iteration_bounds = array<i64: 2>, scalar_prefetch = 0 : i64, scratch_operands = 0 : i64, tpu.core_type = #tpu.core_type<tc>, window_params = [{transform_indices = @transform_0, window_bounds = array<i64: 1, 8, 32>}, {pipeline_mode = #tpu.pipeline_mode<synchronous>, transform_indices = @transform_1, window_bounds = array<i64: 32, 192>}, {pipeline_mode = #tpu.pipeline_mode<synchronous>, transform_indices = @transform_2, window_bounds = array<i64: 64, 32>}, {pipeline_mode = #tpu.pipeline_mode<synchronous>, transform_indices = @transform_3, window_bounds = array<i64: 1, 32>}, {transform_indices = @transform_4, window_bounds = array<i64: 1, 8, 32>}]} {
    %c0 = arith.constant 0 : index
    %c0_0 = arith.constant 0 : index
    %c0_1 = arith.constant 0 : index
    %0 = vector.load %arg1[%c0, %c0_0, %c0_1] : memref<1x8x32xf32, #tpu.memory_space<vmem>>, vector<1x8x32xf32>
    %1 = vector.shape_cast %0 : vector<1x8x32xf32> to vector<8x32xf32>
    %c0_2 = arith.constant 0 : index
    %c0_3 = arith.constant 0 : index
    %2 = vector.load %arg2[%c0_2, %c0_3] : memref<32x192xf32, #tpu.memory_space<vmem>>, vector<32x192xf32>
    %c0_4 = arith.constant 0 : index
    %c0_5 = arith.constant 0 : index
    %3 = vector.load %arg3[%c0_4, %c0_5] : memref<64x32xf32, #tpu.memory_space<vmem>>, vector<64x32xf32>
    %c0_6 = arith.constant 0 : index
    %c0_7 = arith.constant 0 : index
    %4 = vector.load %arg4[%c0_6, %c0_7] : memref<1x32xf32, #tpu.memory_space<vmem>>, vector<1x32xf32>
    %cst = arith.constant dense<0.000000e+00> : vector<8x192xf32>
    %5 = tpu.matmul %1, %2, %cst {dimension_numbers = #tpu.dot_dimension_numbers<[1], [0], [0], [1], [0, 0, 1, 1], [], []>} : vector<8x32xf32>, vector<32x192xf32>, vector<8x192xf32> -> vector<8x192xf32>
    %6 = vector.extract_strided_slice %5 {offsets = [0, 0], sizes = [8, 64], strides = [1, 1]} : vector<8x192xf32> to vector<8x64xf32>
    %cst_8 = arith.constant 2.500000e-01 : f32
    %7 = vector.broadcast %cst_8 : f32 to vector<8x64xf32>
    %8 = arith.mulf %6, %7 : vector<8x64xf32>
    %9 = vector.extract_strided_slice %5 {offsets = [0, 64], sizes = [8, 64], strides = [1, 1]} : vector<8x192xf32> to vector<8x64xf32>
    %10 = vector.extract_strided_slice %5 {offsets = [0, 128], sizes = [8, 64], strides = [1, 1]} : vector<8x192xf32> to vector<8x64xf32>
    %11 = vector.extract_strided_slice %8 {offsets = [0, 0], sizes = [8, 16], strides = [1, 1]} : vector<8x64xf32> to vector<8x16xf32>
    %12 = vector.extract_strided_slice %9 {offsets = [0, 0], sizes = [8, 16], strides = [1, 1]} : vector<8x64xf32> to vector<8x16xf32>
    %13 = vector.extract_strided_slice %10 {offsets = [0, 0], sizes = [8, 16], strides = [1, 1]} : vector<8x64xf32> to vector<8x16xf32>
    %cst_9 = arith.constant dense<0.000000e+00> : vector<8x8xf32>
    %14 = tpu.matmul %11, %12, %cst_9 {dimension_numbers = #tpu.dot_dimension_numbers<[1], [1], [0], [0], [0, 0, 1, 0], [], []>} : vector<8x16xf32>, vector<8x16xf32>, vector<8x8xf32> -> vector<8x8xf32>
    %cst_10 = arith.constant dense<0xFF800000> : vector<8xf32>
    %15 = vector.multi_reduction <maximumf>, %14, %cst_10 [1] : vector<8x8xf32> to vector<8xf32>
    %16 = vector.shape_cast %15 : vector<8xf32> to vector<8x1xf32>
    %17 = vector.broadcast %16 : vector<8x1xf32> to vector<8x8xf32>
    %18 = arith.subf %14, %17 : vector<8x8xf32>
    %19 = math.exp %18 : vector<8x8xf32>
    %cst_11 = arith.constant dense<0.000000e+00> : vector<8xf32>
    %20 = vector.multi_reduction <add>, %19, %cst_11 [1] : vector<8x8xf32> to vector<8xf32>
    %21 = vector.shape_cast %20 : vector<8xf32> to vector<8x1xf32>
    %cst_12 = arith.constant dense<0.000000e+00> : vector<8x16xf32>
    %22 = tpu.matmul %19, %13, %cst_12 {dimension_numbers = #tpu.dot_dimension_numbers<[1], [0], [0], [1], [0, 0, 1, 1], [], []>} : vector<8x8xf32>, vector<8x16xf32>, vector<8x16xf32> -> vector<8x16xf32>
    %23 = tpu.reciprocal %21 {approx = true} : vector<8x1xf32> -> vector<8x1xf32>
    %24 = vector.broadcast %23 : vector<8x1xf32> to vector<8x16xf32>
    %25 = arith.mulf %22, %24 : vector<8x16xf32>
    %26 = vector.extract_strided_slice %8 {offsets = [0, 16], sizes = [8, 16], strides = [1, 1]} : vector<8x64xf32> to vector<8x16xf32>
    %27 = vector.extract_strided_slice %9 {offsets = [0, 16], sizes = [8, 16], strides = [1, 1]} : vector<8x64xf32> to vector<8x16xf32>
    %28 = vector.extract_strided_slice %10 {offsets = [0, 16], sizes = [8, 16], strides = [1, 1]} : vector<8x64xf32> to vector<8x16xf32>
    %cst_13 = arith.constant dense<0.000000e+00> : vector<8x8xf32>
    %29 = tpu.matmul %26, %27, %cst_13 {dimension_numbers = #tpu.dot_dimension_numbers<[1], [1], [0], [0], [0, 0, 1, 0], [], []>} : vector<8x16xf32>, vector<8x16xf32>, vector<8x8xf32> -> vector<8x8xf32>
    %cst_14 = arith.constant dense<0xFF800000> : vector<8xf32>
    %30 = vector.multi_reduction <maximumf>, %29, %cst_14 [1] : vector<8x8xf32> to vector<8xf32>
    %31 = vector.shape_cast %30 : vector<8xf32> to vector<8x1xf32>
    %32 = vector.broadcast %31 : vector<8x1xf32> to vector<8x8xf32>
    %33 = arith.subf %29, %32 : vector<8x8xf32>
    %34 = math.exp %33 : vector<8x8xf32>
    %cst_15 = arith.constant dense<0.000000e+00> : vector<8xf32>
    %35 = vector.multi_reduction <add>, %34, %cst_15 [1] : vector<8x8xf32> to vector<8xf32>
    %36 = vector.shape_cast %35 : vector<8xf32> to vector<8x1xf32>
    %cst_16 = arith.constant dense<0.000000e+00> : vector<8x16xf32>
    %37 = tpu.matmul %34, %28, %cst_16 {dimension_numbers = #tpu.dot_dimension_numbers<[1], [0], [0], [1], [0, 0, 1, 1], [], []>} : vector<8x8xf32>, vector<8x16xf32>, vector<8x16xf32> -> vector<8x16xf32>
    %38 = tpu.reciprocal %36 {approx = true} : vector<8x1xf32> -> vector<8x1xf32>
    %39 = vector.broadcast %38 : vector<8x1xf32> to vector<8x16xf32>
    %40 = arith.mulf %37, %39 : vector<8x16xf32>
    %41 = vector.extract_strided_slice %8 {offsets = [0, 32], sizes = [8, 16], strides = [1, 1]} : vector<8x64xf32> to vector<8x16xf32>
    %42 = vector.extract_strided_slice %9 {offsets = [0, 32], sizes = [8, 16], strides = [1, 1]} : vector<8x64xf32> to vector<8x16xf32>
    %43 = vector.extract_strided_slice %10 {offsets = [0, 32], sizes = [8, 16], strides = [1, 1]} : vector<8x64xf32> to vector<8x16xf32>
    %cst_17 = arith.constant dense<0.000000e+00> : vector<8x8xf32>
    %44 = tpu.matmul %41, %42, %cst_17 {dimension_numbers = #tpu.dot_dimension_numbers<[1], [1], [0], [0], [0, 0, 1, 0], [], []>} : vector<8x16xf32>, vector<8x16xf32>, vector<8x8xf32> -> vector<8x8xf32>
    %cst_18 = arith.constant dense<0xFF800000> : vector<8xf32>
    %45 = vector.multi_reduction <maximumf>, %44, %cst_18 [1] : vector<8x8xf32> to vector<8xf32>
    %46 = vector.shape_cast %45 : vector<8xf32> to vector<8x1xf32>
    %47 = vector.broadcast %46 : vector<8x1xf32> to vector<8x8xf32>
    %48 = arith.subf %44, %47 : vector<8x8xf32>
    %49 = math.exp %48 : vector<8x8xf32>
    %cst_19 = arith.constant dense<0.000000e+00> : vector<8xf32>
    %50 = vector.multi_reduction <add>, %49, %cst_19 [1] : vector<8x8xf32> to vector<8xf32>
    %51 = vector.shape_cast %50 : vector<8xf32> to vector<8x1xf32>
    %cst_20 = arith.constant dense<0.000000e+00> : vector<8x16xf32>
    %52 = tpu.matmul %49, %43, %cst_20 {dimension_numbers = #tpu.dot_dimension_numbers<[1], [0], [0], [1], [0, 0, 1, 1], [], []>} : vector<8x8xf32>, vector<8x16xf32>, vector<8x16xf32> -> vector<8x16xf32>
    %53 = tpu.reciprocal %51 {approx = true} : vector<8x1xf32> -> vector<8x1xf32>
    %54 = vector.broadcast %53 : vector<8x1xf32> to vector<8x16xf32>
    %55 = arith.mulf %52, %54 : vector<8x16xf32>
    %56 = vector.extract_strided_slice %8 {offsets = [0, 48], sizes = [8, 16], strides = [1, 1]} : vector<8x64xf32> to vector<8x16xf32>
    %57 = vector.extract_strided_slice %9 {offsets = [0, 48], sizes = [8, 16], strides = [1, 1]} : vector<8x64xf32> to vector<8x16xf32>
    %58 = vector.extract_strided_slice %10 {offsets = [0, 48], sizes = [8, 16], strides = [1, 1]} : vector<8x64xf32> to vector<8x16xf32>
    %cst_21 = arith.constant dense<0.000000e+00> : vector<8x8xf32>
    %59 = tpu.matmul %56, %57, %cst_21 {dimension_numbers = #tpu.dot_dimension_numbers<[1], [1], [0], [0], [0, 0, 1, 0], [], []>} : vector<8x16xf32>, vector<8x16xf32>, vector<8x8xf32> -> vector<8x8xf32>
    %cst_22 = arith.constant dense<0xFF800000> : vector<8xf32>
    %60 = vector.multi_reduction <maximumf>, %59, %cst_22 [1] : vector<8x8xf32> to vector<8xf32>
    %61 = vector.shape_cast %60 : vector<8xf32> to vector<8x1xf32>
    %62 = vector.broadcast %61 : vector<8x1xf32> to vector<8x8xf32>
    %63 = arith.subf %59, %62 : vector<8x8xf32>
    %64 = math.exp %63 : vector<8x8xf32>
    %cst_23 = arith.constant dense<0.000000e+00> : vector<8xf32>
    %65 = vector.multi_reduction <add>, %64, %cst_23 [1] : vector<8x8xf32> to vector<8xf32>
    %66 = vector.shape_cast %65 : vector<8xf32> to vector<8x1xf32>
    %cst_24 = arith.constant dense<0.000000e+00> : vector<8x16xf32>
    %67 = tpu.matmul %64, %58, %cst_24 {dimension_numbers = #tpu.dot_dimension_numbers<[1], [0], [0], [1], [0, 0, 1, 1], [], []>} : vector<8x8xf32>, vector<8x16xf32>, vector<8x16xf32> -> vector<8x16xf32>
    %68 = tpu.reciprocal %66 {approx = true} : vector<8x1xf32> -> vector<8x1xf32>
    %69 = vector.broadcast %68 : vector<8x1xf32> to vector<8x16xf32>
    %70 = arith.mulf %67, %69 : vector<8x16xf32>
    %71 = tpu.concatenate %25, %40, %55, %70 in 1 : vector<8x16xf32>, vector<8x16xf32>, vector<8x16xf32>, vector<8x16xf32> -> vector<8x64xf32>
    %cst_25 = arith.constant dense<0.000000e+00> : vector<8x32xf32>
    %72 = tpu.matmul %71, %3, %cst_25 {dimension_numbers = #tpu.dot_dimension_numbers<[1], [0], [0], [1], [0, 0, 1, 1], [], []>} : vector<8x64xf32>, vector<64x32xf32>, vector<8x32xf32> -> vector<8x32xf32>
    %73 = vector.broadcast %4 : vector<1x32xf32> to vector<8x32xf32>
    %74 = arith.addf %72, %73 : vector<8x32xf32>
    %c0_26 = arith.constant 0 : index
    %c0_27 = arith.constant 0 : index
    %c0_28 = arith.constant 0 : index
    %75 = vector.load %arg5[%c0_26, %c0_27, %c0_28] : memref<1x8x32xf32, #tpu.memory_space<vmem>>, vector<1x8x32xf32>
    %76 = vector.shape_cast %75 : vector<1x8x32xf32> to vector<8x32xf32>
    %77 = vector.shape_cast %74 : vector<8x32xf32> to vector<1x8x32xf32>
    tpu.vector_store %arg5[%c0_26, %c0_27, %c0_28], %77 {strides = array<i32>} : memref<1x8x32xf32, #tpu.memory_space<vmem>>, vector<1x8x32xf32>,
    return
  }
  func.func @transform_0(%arg0: i32) -> (i32, i32, i32) {
    %c0_i32 = arith.constant 0 : i32
    %c0_i32_0 = arith.constant 0 : i32
    %c0_i32_1 = arith.constant 0 : i32
    return %arg0, %c0_i32, %c0_i32_0 : i32, i32, i32
  }
  func.func @transform_1(%arg0: i32) -> (i32, i32) {
    %c0_i32 = arith.constant 0 : i32
    %c0_i32_0 = arith.constant 0 : i32
    %c0_i32_1 = arith.constant 0 : i32
    return %c0_i32, %c0_i32_0 : i32, i32
  }
  func.func @transform_2(%arg0: i32) -> (i32, i32) {
    %c0_i32 = arith.constant 0 : i32
    %c0_i32_0 = arith.constant 0 : i32
    %c0_i32_1 = arith.constant 0 : i32
    return %c0_i32, %c0_i32_0 : i32, i32
  }
  func.func @transform_3(%arg0: i32) -> (i32, i32) {
    %c0_i32 = arith.constant 0 : i32
    %c0_i32_0 = arith.constant 0 : i32
    %c0_i32_1 = arith.constant 0 : i32
    return %c0_i32, %c0_i32_0 : i32, i32
  }
  func.func @transform_4(%arg0: i32) -> (i32, i32, i32) {
    %c0_i32 = arith.constant 0 : i32
    %c0_i32_0 = arith.constant 0 : i32
    %c0_i32_1 = arith.constant 0 : i32
    return %arg0, %c0_i32, %c0_i32_0 : i32, i32, i32
  }
}

</mosaic_0001>

<llo_original>
// kernel: tpu_custom_call.1
$region0: #{tpu_custom_call.1}
  #allocation0 [shape = 'u32[]', space=smem, size = 0x4, offset = 0x4, fixed_abs, tag = 'smem constant byte address 0x4 - core index']
  #allocation1 [shape = 'u32[144,128]{1,0:T(1,128)}', space=vmem, size = 0x12000, scoped, tag = 'internal scratch']
  %s0 = inlined_call_operand.vmem [shape: f32[2,8,32], index: 0, kind: input, shape index: {}]
  %s1 = inlined_call_operand.vmem [shape: f32[32,192], index: 1, kind: input, shape index: {}]
  %s2 = inlined_call_operand.vmem [shape: f32[64,32], index: 2, kind: input, shape index: {}]
  %s3 = inlined_call_operand.vmem [shape: f32[1,32], index: 3, kind: input, shape index: {}]
  %s4 = inlined_call_operand.hbm [shape: f32[2,8,32], index: 4, kind: output, shape index: {}]
  %s5 = sld [smem:[#allocation0]]
  $region49: #{tpu_custom_call.1} parent=0
    _
  %s7 = ssub.s32 1, %s5
  %s8 = scalar_select 0, %s7, %s5
  $region1: #{tpu_custom_call.1} parent=0
    #allocation2 [shape = 'u8[8192]{0}', space=vmem, size = 0x2000, scoped, tag = 'output window, operand 0']
    #allocation3 [shape = 's32[2]{0}', space=sflag, size = 0x8, scoped, tag = 'scoped memory for tpu_custom_call.1']
    %9 = vsyncpa [#allocation3], 0
    %s10 = scalar_lea.sflag [#allocation3], 1
    %11 = vsyncpa %s10, 0
    loop: start=0, step=1, limit=4
    $region2: #{tpu_custom_call.1} parent=1 // loop_pre_header
      _
    $region3: #{tpu_custom_call.1} parent=1 // loop_header
      %s13 = sphi 0, %s17
      %p14 = scmp.ge.s32.totalorder %s13, 4
      %s23 = sphi 0, %s25
      %s26 = sphi 0, %s23
      %s27 = sphi 0, %s26
      %s43 = sphi 0, %s27
      %s47 = sphi 0, %s47
      %s49 = sphi 0, %s47
      %s50 = sphi 0, %s49
      %s64 = sphi 0, %s50
      %s68 = sphi 0, %s68
      %s70 = sphi 0, %s68
      %s71 = sphi 0, %s70
      %s85 = sphi 0, %s71
      %s89 = sphi 0, %s89
      %s91 = sphi 0, %s89
      %s92 = sphi 0, %s91
      %s106 = sphi 0, %s92
      %s112 = sphi 0, %s114
      %s115 = sphi 0, %s112
      %s116 = sphi 0, %s115
      %s132 = sphi 0, %s116
    $region4: #{tpu_custom_call.1} parent=1 // loop_header_branch
      %16 = sbr.rel (%p14) target = $region8
    $region5: #{tpu_custom_call.1} parent=1 // loop_body
      %s18 = ssub.s32 %s13, 1
      %s19 = ssub.s32 %s13, 2
      %s20 = sadd.s32 %s13, 1
      %s21 = ssub.s32 %s13, %s20
      %p22 = scmp.eq.s32.totalorder %s21, 0
      %s24 = sadd.s32 %s23, 1
      %s25 = scalar_select %p22, %s23, %s24
      %p28 = pneg %p22
      %p29 = scmp.eq.s32.totalorder %s13, 1
      %p30 = por %p28, %p29
      %p31 = scmp.ne.s32.totalorder %s23, %s26
      %p32 = scmp.eq.s32.totalorder %s13, 0
      %p33 = por %p31, %p32
      %p34 = scmp.ne.s32.totalorder %s23, %s26
      %p35 = scmp.eq.s32.totalorder %s18, 1
      %p36 = por %p34, %p35
      %p37 = scmp.ne.s32.totalorder %s26, %s27
      %p38 = scmp.eq.s32.totalorder %s18, 0
      %p39 = por %p37, %p38
      %p40 = scmp.ne.s32.totalorder %s26, %s27
      %p41 = scmp.eq.s32.totalorder %s19, 1
      %p42 = por %p40, %p41
      %p44 = scmp.ne.s32.totalorder %s27, %s43
      %p45 = scmp.eq.s32.totalorder %s19, 0
      %p46 = por %p44, %p45
      %s48 = sadd.s32 %s47, 1
      %p51 = scmp.eq.s32.totalorder %s13, 1
      %p52 = scmp.ne.s32.totalorder %s47, %s49
      %p53 = scmp.eq.s32.totalorder %s13, 0
      %p54 = por %p52, %p53
      %p55 = scmp.ne.s32.totalorder %s47, %s49
      %p56 = scmp.eq.s32.totalorder %s18, 1
      %p57 = por %p55, %p56
      %p58 = scmp.ne.s32.totalorder %s49, %s50
      %p59 = scmp.eq.s32.totalorder %s18, 0
      %p60 = por %p58, %p59
      %p61 = scmp.ne.s32.totalorder %s49, %s50
      %p62 = scmp.eq.s32.totalorder %s19, 1
      %p63 = por %p61, %p62
      %p65 = scmp.ne.s32.totalorder %s50, %s64
      %p66 = scmp.eq.s32.totalorder %s19, 0
      %p67 = por %p65, %p66
      %s69 = sadd.s32 %s68, 1
      %p72 = scmp.eq.s32.totalorder %s13, 1
      %p73 = scmp.ne.s32.totalorder %s68, %s70
      %p74 = scmp.eq.s32.totalorder %s13, 0
      %p75 = por %p73, %p74
      %p76 = scmp.ne.s32.totalorder %s68, %s70
      %p77 = scmp.eq.s32.totalorder %s18, 1
      %p78 = por %p76, %p77
      %p79 = scmp.ne.s32.totalorder %s70, %s71
      %p80 = scmp.eq.s32.totalorder %s18, 0
      %p81 = por %p79, %p80
      %p82 = scmp.ne.s32.totalorder %s70, %s71
      %p83 = scmp.eq.s32.totalorder %s19, 1
      %p84 = por %p82, %p83
      %p86 = scmp.ne.s32.totalorder %s71, %s85
      %p87 = scmp.eq.s32.totalorder %s19, 0
      %p88 = por %p86, %p87
      %s90 = sadd.s32 %s89, 1
      %p93 = scmp.eq.s32.totalorder %s13, 1
      %p94 = scmp.ne.s32.totalorder %s89, %s91
      %p95 = scmp.eq.s32.totalorder %s13, 0
      %p96 = por %p94, %p95
      %p97 = scmp.ne.s32.totalorder %s89, %s91
      %p98 = scmp.eq.s32.totalorder %s18, 1
      %p99 = por %p97, %p98
      %p100 = scmp.ne.s32.totalorder %s91, %s92
      %p101 = scmp.eq.s32.totalorder %s18, 0
      %p102 = por %p100, %p101
      %p103 = scmp.ne.s32.totalorder %s91, %s92
      %p104 = scmp.eq.s32.totalorder %s19, 1
      %p105 = por %p103, %p104
      %p107 = scmp.ne.s32.totalorder %s92, %s106
      %p108 = scmp.eq.s32.totalorder %s19, 0
      %p109 = por %p107, %p108
      %s110 = ssub.s32 %s13, %s20
      %p111 = scmp.eq.s32.totalorder %s110, 0
      %s113 = sadd.s32 %s112, 1
      %s114 = scalar_select %p111, %s112, %s113
      %p117 = pneg %p111
      %p118 = scmp.eq.s32.totalorder %s13, 1
      %p119 = por %p117, %p118
      %p120 = scmp.ne.s32.totalorder %s112, %s115
      %p121 = scmp.eq.s32.totalorder %s13, 0
      %p122 = por %p120, %p121
      %p123 = scmp.ne.s32.totalorder %s112, %s115
      %p124 = scmp.eq.s32.totalorder %s18, 1
      %p125 = por %p123, %p124
      %p126 = scmp.ne.s32.totalorder %s115, %s116
      %p127 = scmp.eq.s32.totalorder %s18, 0
      %p128 = por %p126, %p127
      %p129 = scmp.ne.s32.totalorder %s115, %s116
      %p130 = scmp.eq.s32.totalorder %s19, 1
      %p131 = por %p129, %p130
      %p133 = scmp.ne.s32.totalorder %s116, %s132
      %p134 = scmp.eq.s32.totalorder %s19, 0
      %p135 = por %p133, %p134
      %p136 = scmp.le.s32.totalorder 1, %s13
      %p137 = scmp.lt.s32.totalorder %s13, 3
      %p138 = pnand %p136, %p137
      %p139 = pneg %p138
      // Predicated region
      $region9: #{tpu_custom_call.1} parent=5 // pred_check
        _
      $region10: #{tpu_custom_call.1} parent=5 // pred_check_branch
        %141 = sbr.rel (%p138) target = $region12
      $region11: #{tpu_custom_call.1} parent=5 // pred_region
        %s142 = ssub.s32 %s13, 1
        // Predicated region
        $region13: #{tpu_custom_call.1} parent=11 // pred_check
          %p143 = pneg %p60
        $region14: #{tpu_custom_call.1} parent=11 // pred_check_branch
          %145 = sbr.rel (%p143) target = $region16
        $region15: #{tpu_custom_call.1} parent=11 // pred_region
          _
        $region16: #{tpu_custom_call.1} parent=11 // pred_fallthru
          _
        // Predicated region
        $region17: #{tpu_custom_call.1} parent=11 // pred_check
          %p146 = pneg %p81
        $region18: #{tpu_custom_call.1} parent=11 // pred_check_branch
          %148 = sbr.rel (%p146) target = $region20
        $region19: #{tpu_custom_call.1} parent=11 // pred_region
          _
        $region20: #{tpu_custom_call.1} parent=11 // pred_fallthru
          _
        // Predicated region
        $region21: #{tpu_custom_call.1} parent=11 // pred_check
          %p149 = pneg %p102
        $region22: #{tpu_custom_call.1} parent=11 // pred_check_branch
          %151 = sbr.rel (%p149) target = $region24
        $region23: #{tpu_custom_call.1} parent=11 // pred_region
          _
        $region24: #{tpu_custom_call.1} parent=11 // pred_fallthru
          _
      $region12: #{tpu_custom_call.1} parent=5 // pred_fallthru
        _
      %p152 = scmp.lt.s32.totalorder %s13, 2
      // Predicated region
      $region25: #{tpu_custom_call.1} parent=5 // pred_check
        %p153 = pneg %p152
      $region26: #{tpu_custom_call.1} parent=5 // pred_check_branch
        %155 = sbr.rel (%p153) target = $region28
      $region27: #{tpu_custom_call.1} parent=5 // pred_region
        // Predicated region
        $region29: #{tpu_custom_call.1} parent=27 // pred_check
          %p156 = pneg %p33
        $region30: #{tpu_custom_call.1} parent=27 // pred_check_branch
          %158 = sbr.rel (%p156) target = $region32
        $region31: #{tpu_custom_call.1} parent=27 // pred_region
          %p159 = scmp.lt.s32.totalorder %s13, 1
          %s160 = scalar_select %p159, %s13, 1
          %s161 = smul.addr %s160, 8
          %s162 = scalar_lea.vmem %s0, %s161
        $region32: #{tpu_custom_call.1} parent=27 // pred_fallthru
          _
      $region28: #{tpu_custom_call.1} parent=5 // pred_fallthru
        _
      %p163 = scmp.le.s32.totalorder 1, %s13
      %p164 = scmp.lt.s32.totalorder %s13, 3
      %p165 = pnand %p163, %p164
      %p166 = pneg %p165
      // Predicated region
      $region33: #{tpu_custom_call.1} parent=5 // pred_check
        _
      $region34: #{tpu_custom_call.1} parent=5 // pred_check_branch
        %168 = sbr.rel (%p165) target = $region36
      $region35: #{tpu_custom_call.1} parent=5 // pred_region
        %s169 = ssub.s32 %s13, 1
        %p170 = scmp.lt.s32.totalorder %s18, 1
        %s171 = scalar_select %p170, %s18, 1
        %s172 = smul.addr %s171, 8
        %s173 = scalar_lea.vmem %s0, %s172
        %p174 = pneg %p39
        %p175 = pneg %p36
        %p176 = pneg %p60
        %p177 = pneg %p57
        %p178 = pneg %p81
        %p179 = pneg %p78
        %p180 = pneg %p102
        %p181 = pneg %p99
        %p182 = pneg %p128
        %p183 = pneg %p125
        %s184 = sand.u32 %s115, 1
        %s185 = scalar_lea.sflag [#allocation3], %s184
        %s186 = sand.u32 %s115, 1
        %s187 = smul.addr %s186, 8
        %s188 = scalar_lea.vmem [#allocation2], %s187
        %p189 = scmp.lt.s32.totalorder %s18, 1
        %s190 = scalar_select %p189, %s18, 1
        %s191 = smul.addr %s190, 8
        %s192 = scalar_lea.vmem %s0, %s191
        %v193 = vld [vmem:[%s192] sm:$0xff]
        %v194 = vld [vmem:[%s1] sm:$0xff]
        %v195 = vld [vmem:[%s1 + $0x8] sm:$0xff]
        %v196 = vld [vmem:[%s1 + $0x10] sm:$0xff]
        %v197 = vld [vmem:[%s1 + $0x18] sm:$0xff]
        %v198 = vld [vmem:[%s1 + $0x20] sm:$0xff]
        %v199 = vld [vmem:[%s1 + $0x28] sm:$0xff]
        %v200 = vld [vmem:[%s1 + $0x30] sm:$0xff]
        %v201 = vld [vmem:[%s1 + $0x38] sm:$0xff]
        %v202 = vld [vmem:[%s2] sm:$0xff]
        %v203 = vld [vmem:[%s2 + $0x8] sm:$0xff]
        %v204 = vld [vmem:[%s2 + $0x10] sm:$0xff]
        %v205 = vld [vmem:[%s2 + $0x18] sm:$0xff]
        %v206 = vld [vmem:[%s2 + $0x20] sm:$0xff]
        %v207 = vld [vmem:[%s2 + $0x28] sm:$0xff]
        %v208 = vld [vmem:[%s2 + $0x30] sm:$0xff]
        %v209 = vld [vmem:[%s2 + $0x38] sm:$0xff]
        %v210 = vld [vmem:[%s3] sm:$0x1]
        %vm211 = vcmask 261120
        %v213 = vsel %vm211, %v193, 0
        %215 = vmatprep.subr.mxu0 %v195
        %216 = vmatpush1.msra.mxu0 %v194
        %217 = vmatprep.subr.mxu0 %v197
        %218 = vmatpush1.msra.mxu0 %v196
        %219 = vmatprep.subr.mxu0 %v199
        %220 = vmatpush1.msra.mxu0 %v198
        %221 = vmatprep.subr.mxu0 %v201
        %222 = vmatpush1.msra.mxu0 %v200
        %223 = vmatprep.subr.mxu0 0.0
        %224 = vmatpush1.msra.mxu0 0.0
        %225 = vmatprep.subr.mxu0 0.0
        %226 = vmatpush1.msra.mxu0 0.0
        %227 = vmatprep.subr.mxu0 0.0
        %228 = vmatpush1.msra.mxu0 0.0
        %229 = vmatprep.subr.mxu0 0.0
        %230 = vmatpush1.msra.mxu0 0.0
        %231 = vmatprep.subr.mxu0 0.0
        %232 = vmatpush1.msra.mxu0 0.0
        %233 = vmatprep.subr.mxu0 0.0
        %234 = vmatpush1.msra.mxu0 0.0
        %235 = vmatprep.subr.mxu0 0.0
        %236 = vmatpush1.msra.mxu0 0.0
        %237 = vmatprep.subr.mxu0 0.0
        %238 = vmatpush1.msra.mxu0 0.0
        %239 = vmatprep.subr.mxu0 0.0
        %240 = vmatpush1.msra.mxu0 0.0
        %241 = vmatprep.subr.mxu0 0.0
        %242 = vmatpush1.msra.mxu0 0.0
        %243 = vmatprep.subr.mxu0 0.0
        %244 = vmatpush1.msra.mxu0 0.0
        %245 = vmatprep.subr.mxu0 0.0
        %246 = vmatpush1.msra.mxu0 0.0
        %247 = vmatprep.subr.mxu0 0.0
        %248 = vmatpush1.msra.mxu0 0.0
        %249 = vmatprep.subr.mxu0 0.0
        %250 = vmatpush1.msra.mxu0 0.0
        %251 = vmatprep.subr.mxu0 0.0
        %252 = vmatpush1.msra.mxu0 0.0
        %253 = vmatprep.subr.mxu0 0.0
        %254 = vmatpush1.msra.mxu0 0.0
        %255 = vmatprep.subr.mxu0 0.0
        %256 = vmatpush1.msra.mxu0 0.0
        %257 = vmatprep.subr.mxu0 0.0
        %258 = vmatpush1.msra.mxu0 0.0
        %259 = vmatprep.subr.mxu0 0.0
        %260 = vmatpush1.msra.mxu0 0.0
        %261 = vmatprep.subr.mxu0 0.0
        %262 = vmatpush1.msra.mxu0 0.0
        %263 = vmatprep.subr.mxu0 0.0
        %264 = vmatpush1.msra.mxu0 0.0
        %265 = vmatprep.subr.mxu0 0.0
        %266 = vmatpush1.msra.mxu0 0.0
        %267 = vmatprep.subr.mxu0 0.0
        %268 = vmatpush1.msra.mxu0 0.0
        %269 = vmatprep.subr.mxu0 0.0
        %270 = vmatpush1.msra.mxu0 0.0
        %271 = vmatprep.subr.mxu0 0.0
        %272 = vmatpush1.msra.mxu0 0.0
        %273 = vmatprep.subr.mxu0 0.0
        %274 = vmatpush1.msra.mxu0 0.0
        %275 = vmatprep.subr.mxu0 0.0
        %276 = vmatpush1.msra.mxu0 0.0
        %277 = vmatprep.subr.mxu0 0.0
        %278 = vmatpush1.msra.mxu0 0.0
        %279 = vmatprep.mubr.f32.mxu0 0.0
        %280 = vmatmul.mubr.f32.gmra.mrb[0].mxu0 %v213
        %v281 = vpop.f32.mrb[0].mxu0
        %v282 = vadd.f32 0.0, %v281
        %v283 = vpop.f32.mrb[0].mxu0
        %v284 = vadd.f32 0.0, %v283
        %285 = vdwg.mxu0
        %v286 = vmul.f32 %v282, 0.25
        %288 = vrot.lane.b32.xlu0 %v282, 64
        %v289 = vpop.permute.xlu0 %288
        %vm290 = vcmask 130048
        %v292 = vsel %vm290, %v286, 0
        %v294 = vsel %vm290, %v289, 0
        %296 = vmatprep.subr.mxu0 0.0
        %297 = vmatpush1.xpose.msra.mxu0 %v294
        %298 = vmatprep.subr.mxu0 0.0
        %299 = vmatpush1.xpose.msra.mxu0 0.0
        %300 = vmatprep.subr.mxu0 0.0
        %301 = vmatpush1.xpose.msra.mxu0 0.0
        %302 = vmatprep.subr.mxu0 0.0
        %303 = vmatpush1.xpose.msra.mxu0 0.0
        %304 = vmatprep.subr.mxu0 0.0
        %305 = vmatpush1.xpose.msra.mxu0 0.0
        %306 = vmatprep.subr.mxu0 0.0
        %307 = vmatpush1.xpose.msra.mxu0 0.0
        %308 = vmatprep.subr.mxu0 0.0
        %309 = vmatpush1.xpose.msra.mxu0 0.0
        %310 = vmatprep.subr.mxu0 0.0
        %311 = vmatpush1.xpose.msra.mxu0 0.0
        %312 = vmatprep.subr.mxu0 0.0
        %313 = vmatpush1.xpose.msra.mxu0 0.0
        %314 = vmatprep.subr.mxu0 0.0
        %315 = vmatpush1.xpose.msra.mxu0 0.0
        %316 = vmatprep.subr.mxu0 0.0
        %317 = vmatpush1.xpose.msra.mxu0 0.0
        %318 = vmatprep.subr.mxu0 0.0
        %319 = vmatpush1.xpose.msra.mxu0 0.0
        %320 = vmatprep.subr.mxu0 0.0
        %321 = vmatpush1.xpose.msra.mxu0 0.0
        %322 = vmatprep.subr.mxu0 0.0
        %323 = vmatpush1.xpose.msra.mxu0 0.0
        %324 = vmatprep.subr.mxu0 0.0
        %325 = vmatpush1.xpose.msra.mxu0 0.0
        %326 = vmatprep.subr.mxu0 0.0
        %327 = vmatpush1.xpose.msra.mxu0 0.0
        %328 = vmatprep.subr.mxu0 0.0
        %329 = vmatpush1.xpose.msra.mxu0 0.0
        %330 = vmatprep.subr.mxu0 0.0
        %331 = vmatpush1.xpose.msra.mxu0 0.0
        %332 = vmatprep.subr.mxu0 0.0
        %333 = vmatpush1.xpose.msra.mxu0 0.0
        %334 = vmatprep.subr.mxu0 0.0
        %335 = vmatpush1.xpose.msra.mxu0 0.0
        %336 = vmatprep.subr.mxu0 0.0
        %337 = vmatpush1.xpose.msra.mxu0 0.0
        %338 = vmatprep.subr.mxu0 0.0
        %339 = vmatpush1.xpose.msra.mxu0 0.0
        %340 = vmatprep.subr.mxu0 0.0
        %341 = vmatpush1.xpose.msra.mxu0 0.0
        %342 = vmatprep.subr.mxu0 0.0
        %343 = vmatpush1.xpose.msra.mxu0 0.0
        %344 = vmatprep.subr.mxu0 0.0
        %345 = vmatpush1.xpose.msra.mxu0 0.0
        %346 = vmatprep.subr.mxu0 0.0
        %347 = vmatpush1.xpose.msra.mxu0 0.0
        %348 = vmatprep.subr.mxu0 0.0
        %349 = vmatpush1.xpose.msra.mxu0 0.0
        %350 = vmatprep.subr.mxu0 0.0
        %351 = vmatpush1.xpose.msra.mxu0 0.0
        %352 = vmatprep.subr.mxu0 0.0
        %353 = vmatpush1.xpose.msra.mxu0 0.0
        %354 = vmatprep.subr.mxu0 0.0
        %355 = vmatpush1.xpose.msra.mxu0 0.0
        %356 = vmatprep.subr.mxu0 0.0
        %357 = vmatpush1.xpose.msra.mxu0 0.0
        %358 = vmatprep.subr.mxu0 0.0
        %359 = vmatpush1.xpose.msra.mxu0 0.0
        %360 = vmatprep.mubr.f32.mxu0 0.0
        %361 = vmatmul.mubr.f32.gmra.mrb[0].mxu0 %v292
        %v362 = vpop.f32.mrb[0].mxu0
        %v363 = vadd.f32 0.0, %v362
        %v364 = vpop.f32.mrb[0].mxu0
        %365 = vdwg.mxu0
        %vm366 = vcmask 64512
        %v367 = vsel %vm366, %v363, -inf
        %368 = vmax.xlane.f32.xlu0 %v367
        %v369 = vpop.xlane.xlu0 %368
        %v370 = vsub.f32 %v363, %v369
        %v371 = vmul.f32 %v370, 1.442695
        %v372 = vpow.pop %v371
        %v373 = vsel %vm366, %v372, 0.0
        %374 = vadd.xlane.f32.xlu0 %v373
        %v375 = vpop.xlane.xlu0 %374
        %v377 = vsel %vm366, %v372, 0
        %379 = vmatprep.subr.mxu0 0.0
        %380 = vmatpush1.msra.mxu0 %v284
        %381 = vmatprep.subr.mxu0 0.0
        %382 = vmatpush1.msra.mxu0 0.0
        %383 = vmatprep.subr.mxu0 0.0
        %384 = vmatpush1.msra.mxu0 0.0
        %385 = vmatprep.subr.mxu0 0.0
        %386 = vmatpush1.msra.mxu0 0.0
        %387 = vmatprep.subr.mxu0 0.0
        %388 = vmatpush1.msra.mxu0 0.0
        %389 = vmatprep.subr.mxu0 0.0
        %390 = vmatpush1.msra.mxu0 0.0
        %391 = vmatprep.subr.mxu0 0.0
        %392 = vmatpush1.msra.mxu0 0.0
        %393 = vmatprep.subr.mxu0 0.0
        %394 = vmatpush1.msra.mxu0 0.0
        %395 = vmatprep.subr.mxu0 0.0
        %396 = vmatpush1.msra.mxu0 0.0
        %397 = vmatprep.subr.mxu0 0.0
        %398 = vmatpush1.msra.mxu0 0.0
        %399 = vmatprep.subr.mxu0 0.0
        %400 = vmatpush1.msra.mxu0 0.0
        %401 = vmatprep.subr.mxu0 0.0
        %402 = vmatpush1.msra.mxu0 0.0
        %403 = vmatprep.subr.mxu0 0.0
        %404 = vmatpush1.msra.mxu0 0.0
        %405 = vmatprep.subr.mxu0 0.0
        %406 = vmatpush1.msra.mxu0 0.0
        %407 = vmatprep.subr.mxu0 0.0
        %408 = vmatpush1.msra.mxu0 0.0
        %409 = vmatprep.subr.mxu0 0.0
        %410 = vmatpush1.msra.mxu0 0.0
        %411 = vmatprep.subr.mxu0 0.0
        %412 = vmatpush1.msra.mxu0 0.0
        %413 = vmatprep.subr.mxu0 0.0
        %414 = vmatpush1.msra.mxu0 0.0
        %415 = vmatprep.subr.mxu0 0.0
        %416 = vmatpush1.msra.mxu0 0.0
        %417 = vmatprep.subr.mxu0 0.0
        %418 = vmatpush1.msra.mxu0 0.0
        %419 = vmatprep.subr.mxu0 0.0
        %420 = vmatpush1.msra.mxu0 0.0
        %421 = vmatprep.subr.mxu0 0.0
        %422 = vmatpush1.msra.mxu0 0.0
        %423 = vmatprep.subr.mxu0 0.0
        %424 = vmatpush1.msra.mxu0 0.0
        %425 = vmatprep.subr.mxu0 0.0
        %426 = vmatpush1.msra.mxu0 0.0
        %427 = vmatprep.subr.mxu0 0.0
        %428 = vmatpush1.msra.mxu0 0.0
        %429 = vmatprep.subr.mxu0 0.0
        %430 = vmatpush1.msra.mxu0 0.0
        %431 = vmatprep.subr.mxu0 0.0
        %432 = vmatpush1.msra.mxu0 0.0
        %433 = vmatprep.subr.mxu0 0.0
        %434 = vmatpush1.msra.mxu0 0.0
        %435 = vmatprep.subr.mxu0 0.0
        %436 = vmatpush1.msra.mxu0 0.0
        %437 = vmatprep.subr.mxu0 0.0
        %438 = vmatpush1.msra.mxu0 0.0
        %439 = vmatprep.subr.mxu0 0.0
        %440 = vmatpush1.msra.mxu0 0.0
        %441 = vmatprep.subr.mxu0 0.0
        %442 = vmatpush1.msra.mxu0 0.0
        %443 = vmatprep.mubr.f32.mxu0 0.0
        %444 = vmatmul.mubr.f32.gmra.mrb[0].mxu0 %v377
        %v445 = vpop.f32.mrb[0].mxu0
        %v446 = vadd.f32 0.0, %v445
        %v447 = vpop.f32.mrb[0].mxu0
        %448 = vdwg.mxu0
        %v449 = vrcp.pop %v375
        %v450 = vmul.f32 %v446, %v449
        %451 = vrot.lane.b32.xlu0 %v286, 112
        %v452 = vpop.permute.xlu0 %451
        %453 = vrot.lane.b32.xlu0 %v282, 48
        %v454 = vpop.permute.xlu0 %453
        %v455 = vsel %vm290, %v452, 0
        %v457 = vsel %vm290, %v454, 0
        %459 = vmatprep.subr.mxu0 0.0
        %460 = vmatpush1.xpose.msra.mxu0 %v457
        %461 = vmatprep.subr.mxu0 0.0
        %462 = vmatpush1.xpose.msra.mxu0 0.0
        %463 = vmatprep.subr.mxu0 0.0
        %464 = vmatpush1.xpose.msra.mxu0 0.0
        %465 = vmatprep.subr.mxu0 0.0
        %466 = vmatpush1.xpose.msra.mxu0 0.0
        %467 = vmatprep.subr.mxu0 0.0
        %468 = vmatpush1.xpose.msra.mxu0 0.0
        %469 = vmatprep.subr.mxu0 0.0
        %470 = vmatpush1.xpose.msra.mxu0 0.0
        %471 = vmatprep.subr.mxu0 0.0
        %472 = vmatpush1.xpose.msra.mxu0 0.0
        %473 = vmatprep.subr.mxu0 0.0
        %474 = vmatpush1.xpose.msra.mxu0 0.0
        %475 = vmatprep.subr.mxu0 0.0
        %476 = vmatpush1.xpose.msra.mxu0 0.0
        %477 = vmatprep.subr.mxu0 0.0
        %478 = vmatpush1.xpose.msra.mxu0 0.0
        %479 = vmatprep.subr.mxu0 0.0
        %480 = vmatpush1.xpose.msra.mxu0 0.0
        %481 = vmatprep.subr.mxu0 0.0
        %482 = vmatpush1.xpose.msra.mxu0 0.0
        %483 = vmatprep.subr.mxu0 0.0
        %484 = vmatpush1.xpose.msra.mxu0 0.0
        %485 = vmatprep.subr.mxu0 0.0
        %486 = vmatpush1.xpose.msra.mxu0 0.0
        %487 = vmatprep.subr.mxu0 0.0
        %488 = vmatpush1.xpose.msra.mxu0 0.0
        %489 = vmatprep.subr.mxu0 0.0
        %490 = vmatpush1.xpose.msra.mxu0 0.0
        %491 = vmatprep.subr.mxu0 0.0
        %492 = vmatpush1.xpose.msra.mxu0 0.0
        %493 = vmatprep.subr.mxu0 0.0
        %494 = vmatpush1.xpose.msra.mxu0 0.0
        %495 = vmatprep.subr.mxu0 0.0
        %496 = vmatpush1.xpose.msra.mxu0 0.0
        %497 = vmatprep.subr.mxu0 0.0
        %498 = vmatpush1.xpose.msra.mxu0 0.0
        %499 = vmatprep.subr.mxu0 0.0
        %500 = vmatpush1.xpose.msra.mxu0 0.0
        %501 = vmatprep.subr.mxu0 0.0
        %502 = vmatpush1.xpose.msra.mxu0 0.0
        %503 = vmatprep.subr.mxu0 0.0
        %504 = vmatpush1.xpose.msra.mxu0 0.0
        %505 = vmatprep.subr.mxu0 0.0
        %506 = vmatpush1.xpose.msra.mxu0 0.0
        %507 = vmatprep.subr.mxu0 0.0
        %508 = vmatpush1.xpose.msra.mxu0 0.0
        %509 = vmatprep.subr.mxu0 0.0
        %510 = vmatpush1.xpose.msra.mxu0 0.0
        %511 = vmatprep.subr.mxu0 0.0
        %512 = vmatpush1.xpose.msra.mxu0 0.0
        %513 = vmatprep.subr.mxu0 0.0
        %514 = vmatpush1.xpose.msra.mxu0 0.0
        %515 = vmatprep.subr.mxu0 0.0
        %516 = vmatpush1.xpose.msra.mxu0 0.0
        %517 = vmatprep.subr.mxu0 0.0
        %518 = vmatpush1.xpose.msra.mxu0 0.0
        %519 = vmatprep.subr.mxu0 0.0
        %520 = vmatpush1.xpose.msra.mxu0 0.0
        %521 = vmatprep.subr.mxu0 0.0
        %522 = vmatpush1.xpose.msra.mxu0 0.0
        %523 = vmatprep.mubr.f32.mxu0 0.0
        %524 = vmatmul.mubr.f32.gmra.mrb[0].mxu0 %v455
        %v525 = vpop.f32.mrb[0].mxu0
        %v526 = vadd.f32 0.0, %v525
        %v527 = vpop.f32.mrb[0].mxu0
        %528 = vdwg.mxu0
        %v529 = vsel %vm366, %v526, -inf
        %530 = vmax.xlane.f32.xlu0 %v529
        %v531 = vpop.xlane.xlu0 %530
        %v532 = vsub.f32 %v526, %v531
        %v533 = vmul.f32 %v532, 1.442695
        %v534 = vpow.pop %v533
        %v535 = vsel %vm366, %v534, 0.0
        %536 = vadd.xlane.f32.xlu0 %v535
        %v537 = vpop.xlane.xlu0 %536
        %539 = vrot.lane.b32.xlu0 %v284, 112
        %v540 = vpop.permute.xlu0 %539
        %v543 = vsel %vm366, %v534, 0
        %545 = vmatprep.subr.mxu0 0.0
        %546 = vmatpush1.msra.mxu0 %v540
        %547 = vmatprep.subr.mxu0 0.0
        %548 = vmatpush1.msra.mxu0 0.0
        %549 = vmatprep.subr.mxu0 0.0
        %550 = vmatpush1.msra.mxu0 0.0
        %551 = vmatprep.subr.mxu0 0.0
        %552 = vmatpush1.msra.mxu0 0.0
        %553 = vmatprep.subr.mxu0 0.0
        %554 = vmatpush1.msra.mxu0 0.0
        %555 = vmatprep.subr.mxu0 0.0
        %556 = vmatpush1.msra.mxu0 0.0
        %557 = vmatprep.subr.mxu0 0.0
        %558 = vmatpush1.msra.mxu0 0.0
        %559 = vmatprep.subr.mxu0 0.0
        %560 = vmatpush1.msra.mxu0 0.0
        %561 = vmatprep.subr.mxu0 0.0
        %562 = vmatpush1.msra.mxu0 0.0
        %563 = vmatprep.subr.mxu0 0.0
        %564 = vmatpush1.msra.mxu0 0.0
        %565 = vmatprep.subr.mxu0 0.0
        %566 = vmatpush1.msra.mxu0 0.0
        %567 = vmatprep.subr.mxu0 0.0
        %568 = vmatpush1.msra.mxu0 0.0
        %569 = vmatprep.subr.mxu0 0.0
        %570 = vmatpush1.msra.mxu0 0.0
        %571 = vmatprep.subr.mxu0 0.0
        %572 = vmatpush1.msra.mxu0 0.0
        %573 = vmatprep.subr.mxu0 0.0
        %574 = vmatpush1.msra.mxu0 0.0
        %575 = vmatprep.subr.mxu0 0.0
        %576 = vmatpush1.msra.mxu0 0.0
        %577 = vmatprep.subr.mxu0 0.0
        %578 = vmatpush1.msra.mxu0 0.0
        %579 = vmatprep.subr.mxu0 0.0
        %580 = vmatpush1.msra.mxu0 0.0
        %581 = vmatprep.subr.mxu0 0.0
        %582 = vmatpush1.msra.mxu0 0.0
        %583 = vmatprep.subr.mxu0 0.0
        %584 = vmatpush1.msra.mxu0 0.0
        %585 = vmatprep.subr.mxu0 0.0
        %586 = vmatpush1.msra.mxu0 0.0
        %587 = vmatprep.subr.mxu0 0.0
        %588 = vmatpush1.msra.mxu0 0.0
        %589 = vmatprep.subr.mxu0 0.0
        %590 = vmatpush1.msra.mxu0 0.0
        %591 = vmatprep.subr.mxu0 0.0
        %592 = vmatpush1.msra.mxu0 0.0
        %593 = vmatprep.subr.mxu0 0.0
        %594 = vmatpush1.msra.mxu0 0.0
        %595 = vmatprep.subr.mxu0 0.0
        %596 = vmatpush1.msra.mxu0 0.0
        %597 = vmatprep.subr.mxu0 0.0
        %598 = vmatpush1.msra.mxu0 0.0
        %599 = vmatprep.subr.mxu0 0.0
        %600 = vmatpush1.msra.mxu0 0.0
        %601 = vmatprep.subr.mxu0 0.0
        %602 = vmatpush1.msra.mxu0 0.0
        %603 = vmatprep.subr.mxu0 0.0
        %604 = vmatpush1.msra.mxu0 0.0
        %605 = vmatprep.subr.mxu0 0.0
        %606 = vmatpush1.msra.mxu0 0.0
        %607 = vmatprep.subr.mxu0 0.0
        %608 = vmatpush1.msra.mxu0 0.0
        %609 = vmatprep.mubr.f32.mxu0 0.0
        %610 = vmatmul.mubr.f32.gmra.mrb[0].mxu0 %v543
        %v611 = vpop.f32.mrb[0].mxu0
        %v612 = vadd.f32 0.0, %v611
        %v613 = vpop.f32.mrb[0].mxu0
        %614 = vdwg.mxu0
        %v615 = vrcp.pop %v537
        %v616 = vmul.f32 %v612, %v615
        %617 = vrot.lane.b32.xlu0 %v286, 96
        %v618 = vpop.permute.xlu0 %617
        %619 = vrot.lane.b32.xlu0 %v282, 32
        %v620 = vpop.permute.xlu0 %619
        %v621 = vsel %vm290, %v618, 0
        %v623 = vsel %vm290, %v620, 0
        %625 = vmatprep.subr.mxu0 0.0
        %626 = vmatpush1.xpose.msra.mxu0 %v623
        %627 = vmatprep.subr.mxu0 0.0
        %628 = vmatpush1.xpose.msra.mxu0 0.0
        %629 = vmatprep.subr.mxu0 0.0
        %630 = vmatpush1.xpose.msra.mxu0 0.0
        %631 = vmatprep.subr.mxu0 0.0
        %632 = vmatpush1.xpose.msra.mxu0 0.0
        %633 = vmatprep.subr.mxu0 0.0
        %634 = vmatpush1.xpose.msra.mxu0 0.0
        %635 = vmatprep.subr.mxu0 0.0
        %636 = vmatpush1.xpose.msra.mxu0 0.0
        %637 = vmatprep.subr.mxu0 0.0
        %638 = vmatpush1.xpose.msra.mxu0 0.0
        %639 = vmatprep.subr.mxu0 0.0
        %640 = vmatpush1.xpose.msra.mxu0 0.0
        %641 = vmatprep.subr.mxu0 0.0
        %642 = vmatpush1.xpose.msra.mxu0 0.0
        %643 = vmatprep.subr.mxu0 0.0
        %644 = vmatpush1.xpose.msra.mxu0 0.0
        %645 = vmatprep.subr.mxu0 0.0
        %646 = vmatpush1.xpose.msra.mxu0 0.0
        %647 = vmatprep.subr.mxu0 0.0
        %648 = vmatpush1.xpose.msra.mxu0 0.0
        %649 = vmatprep.subr.mxu0 0.0
        %650 = vmatpush1.xpose.msra.mxu0 0.0
        %651 = vmatprep.subr.mxu0 0.0
        %652 = vmatpush1.xpose.msra.mxu0 0.0
        %653 = vmatprep.subr.mxu0 0.0
        %654 = vmatpush1.xpose.msra.mxu0 0.0
        %655 = vmatprep.subr.mxu0 0.0
        %656 = vmatpush1.xpose.msra.mxu0 0.0
        %657 = vmatprep.subr.mxu0 0.0
        %658 = vmatpush1.xpose.msra.mxu0 0.0
        %659 = vmatprep.subr.mxu0 0.0
        %660 = vmatpush1.xpose.msra.mxu0 0.0
        %661 = vmatprep.subr.mxu0 0.0
        %662 = vmatpush1.xpose.msra.mxu0 0.0
        %663 = vmatprep.subr.mxu0 0.0
        %664 = vmatpush1.xpose.msra.mxu0 0.0
        %665 = vmatprep.subr.mxu0 0.0
        %666 = vmatpush1.xpose.msra.mxu0 0.0
        %667 = vmatprep.subr.mxu0 0.0
        %668 = vmatpush1.xpose.msra.mxu0 0.0
        %669 = vmatprep.subr.mxu0 0.0
        %670 = vmatpush1.xpose.msra.mxu0 0.0
        %671 = vmatprep.subr.mxu0 0.0
        %672 = vmatpush1.xpose.msra.mxu0 0.0
        %673 = vmatprep.subr.mxu0 0.0
        %674 = vmatpush1.xpose.msra.mxu0 0.0
        %675 = vmatprep.subr.mxu0 0.0
        %676 = vmatpush1.xpose.msra.mxu0 0.0
        %677 = vmatprep.subr.mxu0 0.0
        %678 = vmatpush1.xpose.msra.mxu0 0.0
        %679 = vmatprep.subr.mxu0 0.0
        %680 = vmatpush1.xpose.msra.mxu0 0.0
        %681 = vmatprep.subr.mxu0 0.0
        %682 = vmatpush1.xpose.msra.mxu0 0.0
        %683 = vmatprep.subr.mxu0 0.0
        %684 = vmatpush1.xpose.msra.mxu0 0.0
        %685 = vmatprep.subr.mxu0 0.0
        %686 = vmatpush1.xpose.msra.mxu0 0.0
        %687 = vmatprep.subr.mxu0 0.0
        %688 = vmatpush1.xpose.msra.mxu0 0.0
        %689 = vmatprep.mubr.f32.mxu0 0.0
        %690 = vmatmul.mubr.f32.gmra.mrb[0].mxu0 %v621
        %v691 = vpop.f32.mrb[0].mxu0
        %v692 = vadd.f32 0.0, %v691
        %v693 = vpop.f32.mrb[0].mxu0
        %694 = vdwg.mxu0
        %v695 = vsel %vm366, %v692, -inf
        %696 = vmax.xlane.f32.xlu0 %v695
        %v697 = vpop.xlane.xlu0 %696
        %v698 = vsub.f32 %v692, %v697
        %v699 = vmul.f32 %v698, 1.442695
        %v700 = vpow.pop %v699
        %v701 = vsel %vm366, %v700, 0.0
        %702 = vadd.xlane.f32.xlu0 %v701
        %v703 = vpop.xlane.xlu0 %702
        %704 = vrot.lane.b32.xlu0 %v284, 96
        %v705 = vpop.permute.xlu0 %704
        %v708 = vsel %vm366, %v700, 0
        %710 = vmatprep.subr.mxu0 0.0
        %711 = vmatpush1.msra.mxu0 %v705
        %712 = vmatprep.subr.mxu0 0.0
        %713 = vmatpush1.msra.mxu0 0.0
        %714 = vmatprep.subr.mxu0 0.0
        %715 = vmatpush1.msra.mxu0 0.0
        %716 = vmatprep.subr.mxu0 0.0
        %717 = vmatpush1.msra.mxu0 0.0
        %718 = vmatprep.subr.mxu0 0.0
        %719 = vmatpush1.msra.mxu0 0.0
        %720 = vmatprep.subr.mxu0 0.0
        %721 = vmatpush1.msra.mxu0 0.0
        %722 = vmatprep.subr.mxu0 0.0
        %723 = vmatpush1.msra.mxu0 0.0
        %724 = vmatprep.subr.mxu0 0.0
        %725 = vmatpush1.msra.mxu0 0.0
        %726 = vmatprep.subr.mxu0 0.0
        %727 = vmatpush1.msra.mxu0 0.0
        %728 = vmatprep.subr.mxu0 0.0
        %729 = vmatpush1.msra.mxu0 0.0
        %730 = vmatprep.subr.mxu0 0.0
        %731 = vmatpush1.msra.mxu0 0.0
        %732 = vmatprep.subr.mxu0 0.0
        %733 = vmatpush1.msra.mxu0 0.0
        %734 = vmatprep.subr.mxu0 0.0
        %735 = vmatpush1.msra.mxu0 0.0
        %736 = vmatprep.subr.mxu0 0.0
        %737 = vmatpush1.msra.mxu0 0.0
        %738 = vmatprep.subr.mxu0 0.0
        %739 = vmatpush1.msra.mxu0 0.0
        %740 = vmatprep.subr.mxu0 0.0
        %741 = vmatpush1.msra.mxu0 0.0
        %742 = vmatprep.subr.mxu0 0.0
        %743 = vmatpush1.msra.mxu0 0.0
        %744 = vmatprep.subr.mxu0 0.0
        %745 = vmatpush1.msra.mxu0 0.0
        %746 = vmatprep.subr.mxu0 0.0
        %747 = vmatpush1.msra.mxu0 0.0
        %748 = vmatprep.subr.mxu0 0.0
        %749 = vmatpush1.msra.mxu0 0.0
        %750 = vmatprep.subr.mxu0 0.0
        %751 = vmatpush1.msra.mxu0 0.0
        %752 = vmatprep.subr.mxu0 0.0
        %753 = vmatpush1.msra.mxu0 0.0
        %754 = vmatprep.subr.mxu0 0.0
        %755 = vmatpush1.msra.mxu0 0.0
        %756 = vmatprep.subr.mxu0 0.0
        %757 = vmatpush1.msra.mxu0 0.0
        %758 = vmatprep.subr.mxu0 0.0
        %759 = vmatpush1.msra.mxu0 0.0
        %760 = vmatprep.subr.mxu0 0.0
        %761 = vmatpush1.msra.mxu0 0.0
        %762 = vmatprep.subr.mxu0 0.0
        %763 = vmatpush1.msra.mxu0 0.0
        %764 = vmatprep.subr.mxu0 0.0
        %765 = vmatpush1.msra.mxu0 0.0
        %766 = vmatprep.subr.mxu0 0.0
        %767 = vmatpush1.msra.mxu0 0.0
        %768 = vmatprep.subr.mxu0 0.0
        %769 = vmatpush1.msra.mxu0 0.0
        %770 = vmatprep.subr.mxu0 0.0
        %771 = vmatpush1.msra.mxu0 0.0
        %772 = vmatprep.subr.mxu0 0.0
        %773 = vmatpush1.msra.mxu0 0.0
        %774 = vmatprep.mubr.f32.mxu0 0.0
        %775 = vmatmul.mubr.f32.gmra.mrb[0].mxu0 %v708
        %v776 = vpop.f32.mrb[0].mxu0
        %v777 = vadd.f32 0.0, %v776
        %v778 = vpop.f32.mrb[0].mxu0
        %779 = vdwg.mxu0
        %v780 = vrcp.pop %v703
        %v781 = vmul.f32 %v777, %v780
        %782 = vrot.lane.b32.xlu0 %v286, 80
        %v783 = vpop.permute.xlu0 %782
        %784 = vrot.lane.b32.xlu0 %v282, 16
        %v785 = vpop.permute.xlu0 %784
        %v786 = vsel %vm290, %v783, 0
        %v788 = vsel %vm290, %v785, 0
        %790 = vmatprep.subr.mxu0 0.0
        %791 = vmatpush1.xpose.msra.mxu0 %v788
        %792 = vmatprep.subr.mxu0 0.0
        %793 = vmatpush1.xpose.msra.mxu0 0.0
        %794 = vmatprep.subr.mxu0 0.0
        %795 = vmatpush1.xpose.msra.mxu0 0.0
        %796 = vmatprep.subr.mxu0 0.0
        %797 = vmatpush1.xpose.msra.mxu0 0.0
        %798 = vmatprep.subr.mxu0 0.0
        %799 = vmatpush1.xpose.msra.mxu0 0.0
        %800 = vmatprep.subr.mxu0 0.0
        %801 = vmatpush1.xpose.msra.mxu0 0.0
        %802 = vmatprep.subr.mxu0 0.0
        %803 = vmatpush1.xpose.msra.mxu0 0.0
        %804 = vmatprep.subr.mxu0 0.0
        %805 = vmatpush1.xpose.msra.mxu0 0.0
        %806 = vmatprep.subr.mxu0 0.0
        %807 = vmatpush1.xpose.msra.mxu0 0.0
        %808 = vmatprep.subr.mxu0 0.0
        %809 = vmatpush1.xpose.msra.mxu0 0.0
        %810 = vmatprep.subr.mxu0 0.0
        %811 = vmatpush1.xpose.msra.mxu0 0.0
        %812 = vmatprep.subr.mxu0 0.0
        %813 = vmatpush1.xpose.msra.mxu0 0.0
        %814 = vmatprep.subr.mxu0 0.0
        %815 = vmatpush1.xpose.msra.mxu0 0.0
        %816 = vmatprep.subr.mxu0 0.0
        %817 = vmatpush1.xpose.msra.mxu0 0.0
        %818 = vmatprep.subr.mxu0 0.0
        %819 = vmatpush1.xpose.msra.mxu0 0.0
        %820 = vmatprep.subr.mxu0 0.0
        %821 = vmatpush1.xpose.msra.mxu0 0.0
        %822 = vmatprep.subr.mxu0 0.0
        %823 = vmatpush1.xpose.msra.mxu0 0.0
        %824 = vmatprep.subr.mxu0 0.0
        %825 = vmatpush1.xpose.msra.mxu0 0.0
        %826 = vmatprep.subr.mxu0 0.0
        %827 = vmatpush1.xpose.msra.mxu0 0.0
        %828 = vmatprep.subr.mxu0 0.0
        %829 = vmatpush1.xpose.msra.mxu0 0.0
        %830 = vmatprep.subr.mxu0 0.0
        %831 = vmatpush1.xpose.msra.mxu0 0.0
        %832 = vmatprep.subr.mxu0 0.0
        %833 = vmatpush1.xpose.msra.mxu0 0.0
        %834 = vmatprep.subr.mxu0 0.0
        %835 = vmatpush1.xpose.msra.mxu0 0.0
        %836 = vmatprep.subr.mxu0 0.0
        %837 = vmatpush1.xpose.msra.mxu0 0.0
        %838 = vmatprep.subr.mxu0 0.0
        %839 = vmatpush1.xpose.msra.mxu0 0.0
        %840 = vmatprep.subr.mxu0 0.0
        %841 = vmatpush1.xpose.msra.mxu0 0.0
        %842 = vmatprep.subr.mxu0 0.0
        %843 = vmatpush1.xpose.msra.mxu0 0.0
        %844 = vmatprep.subr.mxu0 0.0
        %845 = vmatpush1.xpose.msra.mxu0 0.0
        %846 = vmatprep.subr.mxu0 0.0
        %847 = vmatpush1.xpose.msra.mxu0 0.0
        %848 = vmatprep.subr.mxu0 0.0
        %849 = vmatpush1.xpose.msra.mxu0 0.0
        %850 = vmatprep.subr.mxu0 0.0
        %851 = vmatpush1.xpose.msra.mxu0 0.0
        %852 = vmatprep.subr.mxu0 0.0
        %853 = vmatpush1.xpose.msra.mxu0 0.0
        %854 = vmatprep.mubr.f32.mxu0 0.0
        %855 = vmatmul.mubr.f32.gmra.mrb[0].mxu0 %v786
        %v856 = vpop.f32.mrb[0].mxu0
        %v857 = vadd.f32 0.0, %v856
        %v858 = vpop.f32.mrb[0].mxu0
        %859 = vdwg.mxu0
        %v860 = vsel %vm366, %v857, -inf
        %861 = vmax.xlane.f32.xlu0 %v860
        %v862 = vpop.xlane.xlu0 %861
        %v863 = vsub.f32 %v857, %v862
        %v864 = vmul.f32 %v863, 1.442695
        %v865 = vpow.pop %v864
        %v866 = vsel %vm366, %v865, 0.0
        %867 = vadd.xlane.f32.xlu0 %v866
        %v868 = vpop.xlane.xlu0 %867
        %869 = vrot.lane.b32.xlu0 %v284, 80
        %v870 = vpop.permute.xlu0 %869
        %v873 = vsel %vm366, %v865, 0
        %875 = vmatprep.subr.mxu0 0.0
        %876 = vmatpush1.msra.mxu0 %v870
        %877 = vmatprep.subr.mxu0 0.0
        %878 = vmatpush1.msra.mxu0 0.0
        %879 = vmatprep.subr.mxu0 0.0
        %880 = vmatpush1.msra.mxu0 0.0
        %881 = vmatprep.subr.mxu0 0.0
        %882 = vmatpush1.msra.mxu0 0.0
        %883 = vmatprep.subr.mxu0 0.0
        %884 = vmatpush1.msra.mxu0 0.0
        %885 = vmatprep.subr.mxu0 0.0
        %886 = vmatpush1.msra.mxu0 0.0
        %887 = vmatprep.subr.mxu0 0.0
        %888 = vmatpush1.msra.mxu0 0.0
        %889 = vmatprep.subr.mxu0 0.0
        %890 = vmatpush1.msra.mxu0 0.0
        %891 = vmatprep.subr.mxu0 0.0
        %892 = vmatpush1.msra.mxu0 0.0
        %893 = vmatprep.subr.mxu0 0.0
        %894 = vmatpush1.msra.mxu0 0.0
        %895 = vmatprep.subr.mxu0 0.0
        %896 = vmatpush1.msra.mxu0 0.0
        %897 = vmatprep.subr.mxu0 0.0
        %898 = vmatpush1.msra.mxu0 0.0
        %899 = vmatprep.subr.mxu0 0.0
        %900 = vmatpush1.msra.mxu0 0.0
        %901 = vmatprep.subr.mxu0 0.0
        %902 = vmatpush1.msra.mxu0 0.0
        %903 = vmatprep.subr.mxu0 0.0
        %904 = vmatpush1.msra.mxu0 0.0
        %905 = vmatprep.subr.mxu0 0.0
        %906 = vmatpush1.msra.mxu0 0.0
        %907 = vmatprep.subr.mxu0 0.0
        %908 = vmatpush1.msra.mxu0 0.0
        %909 = vmatprep.subr.mxu0 0.0
        %910 = vmatpush1.msra.mxu0 0.0
        %911 = vmatprep.subr.mxu0 0.0
        %912 = vmatpush1.msra.mxu0 0.0
        %913 = vmatprep.subr.mxu0 0.0
        %914 = vmatpush1.msra.mxu0 0.0
        %915 = vmatprep.subr.mxu0 0.0
        %916 = vmatpush1.msra.mxu0 0.0
        %917 = vmatprep.subr.mxu0 0.0
        %918 = vmatpush1.msra.mxu0 0.0
        %919 = vmatprep.subr.mxu0 0.0
        %920 = vmatpush1.msra.mxu0 0.0
        %921 = vmatprep.subr.mxu0 0.0
        %922 = vmatpush1.msra.mxu0 0.0
        %923 = vmatprep.subr.mxu0 0.0
        %924 = vmatpush1.msra.mxu0 0.0
        %925 = vmatprep.subr.mxu0 0.0
        %926 = vmatpush1.msra.mxu0 0.0
        %927 = vmatprep.subr.mxu0 0.0
        %928 = vmatpush1.msra.mxu0 0.0
        %929 = vmatprep.subr.mxu0 0.0
        %930 = vmatpush1.msra.mxu0 0.0
        %931 = vmatprep.subr.mxu0 0.0
        %932 = vmatpush1.msra.mxu0 0.0
        %933 = vmatprep.subr.mxu0 0.0
        %934 = vmatpush1.msra.mxu0 0.0
        %935 = vmatprep.subr.mxu0 0.0
        %936 = vmatpush1.msra.mxu0 0.0
        %937 = vmatprep.subr.mxu0 0.0
        %938 = vmatpush1.msra.mxu0 0.0
        %939 = vmatprep.mubr.f32.mxu0 0.0
        %940 = vmatmul.mubr.f32.gmra.mrb[0].mxu0 %v873
        %v941 = vpop.f32.mrb[0].mxu0
        %v942 = vadd.f32 0.0, %v941
        %v943 = vpop.f32.mrb[0].mxu0
        %944 = vdwg.mxu0
        %v945 = vrcp.pop %v868
        %v946 = vmul.f32 %v942, %v945
        %948 = vrot.lane.b32.xlu0 %v616, 16
        %v949 = vpop.permute.xlu0 %948
        %952 = vrot.lane.b32.xlu0 %v781, 32
        %v953 = vpop.permute.xlu0 %952
        %956 = vrot.lane.b32.xlu0 %v946, 48
        %v957 = vpop.permute.xlu0 %956
        %v959 = vsel %vm290, %v450, %v949
        %v960 = vsel %vm211, %v959, %v953
        %vm961 = vcmask 392192
        %v962 = vsel %vm961, %v960, %v957
        %v964 = vlaneseq
        %v965 = vshrl.u32 %v964, 7
        %v966 = vsub.s32 0, %v965
        %v967 = vrot.slane %v210, %v966
        %vm969 = vcmask 523264
        %v971 = vsel %vm969, %v962, 0
        %973 = vmatprep.subr.mxu0 0.0
        %974 = vmatpush1.msra.mxu0 %v202
        %975 = vmatprep.subr.mxu0 0.0
        %976 = vmatpush1.msra.mxu0 %v203
        %977 = vmatprep.subr.mxu0 0.0
        %978 = vmatpush1.msra.mxu0 %v204
        %979 = vmatprep.subr.mxu0 0.0
        %980 = vmatpush1.msra.mxu0 %v205
        %981 = vmatprep.subr.mxu0 0.0
        %982 = vmatpush1.msra.mxu0 %v206
        %983 = vmatprep.subr.mxu0 0.0
        %984 = vmatpush1.msra.mxu0 %v207
        %985 = vmatprep.subr.mxu0 0.0
        %986 = vmatpush1.msra.mxu0 %v208
        %987 = vmatprep.subr.mxu0 0.0
        %988 = vmatpush1.msra.mxu0 %v209
        %989 = vmatprep.subr.mxu0 0.0
        %990 = vmatpush1.msra.mxu0 0.0
        %991 = vmatprep.subr.mxu0 0.0
        %992 = vmatpush1.msra.mxu0 0.0
        %993 = vmatprep.subr.mxu0 0.0
        %994 = vmatpush1.msra.mxu0 0.0
        %995 = vmatprep.subr.mxu0 0.0
        %996 = vmatpush1.msra.mxu0 0.0
        %997 = vmatprep.subr.mxu0 0.0
        %998 = vmatpush1.msra.mxu0 0.0
        %999 = vmatprep.subr.mxu0 0.0
        %1000 = vmatpush1.msra.mxu0 0.0
        %1001 = vmatprep.subr.mxu0 0.0
        %1002 = vmatpush1.msra.mxu0 0.0
        %1003 = vmatprep.subr.mxu0 0.0
        %1004 = vmatpush1.msra.mxu0 0.0
        %1005 = vmatprep.subr.mxu0 0.0
        %1006 = vmatpush1.msra.mxu0 0.0
        %1007 = vmatprep.subr.mxu0 0.0
        %1008 = vmatpush1.msra.mxu0 0.0
        %1009 = vmatprep.subr.mxu0 0.0
        %1010 = vmatpush1.msra.mxu0 0.0
        %1011 = vmatprep.subr.mxu0 0.0
        %1012 = vmatpush1.msra.mxu0 0.0
        %1013 = vmatprep.subr.mxu0 0.0
        %1014 = vmatpush1.msra.mxu0 0.0
        %1015 = vmatprep.subr.mxu0 0.0
        %1016 = vmatpush1.msra.mxu0 0.0
        %1017 = vmatprep.subr.mxu0 0.0
        %1018 = vmatpush1.msra.mxu0 0.0
        %1019 = vmatprep.subr.mxu0 0.0
        %1020 = vmatpush1.msra.mxu0 0.0
        %1021 = vmatprep.subr.mxu0 0.0
        %1022 = vmatpush1.msra.mxu0 0.0
        %1023 = vmatprep.subr.mxu0 0.0
        %1024 = vmatpush1.msra.mxu0 0.0
        %1025 = vmatprep.subr.mxu0 0.0
        %1026 = vmatpush1.msra.mxu0 0.0
        %1027 = vmatprep.subr.mxu0 0.0
        %1028 = vmatpush1.msra.mxu0 0.0
        %1029 = vmatprep.subr.mxu0 0.0
        %1030 = vmatpush1.msra.mxu0 0.0
        %1031 = vmatprep.subr.mxu0 0.0
        %1032 = vmatpush1.msra.mxu0 0.0
        %1033 = vmatprep.subr.mxu0 0.0
        %1034 = vmatpush1.msra.mxu0 0.0
        %1035 = vmatprep.subr.mxu0 0.0
        %1036 = vmatpush1.msra.mxu0 0.0
        %1037 = vmatprep.mubr.f32.mxu0 0.0
        %1038 = vmatmul.mubr.f32.gmra.mrb[0].mxu0 %v971
        %v1039 = vpop.f32.mrb[0].mxu0
        %v1040 = vadd.f32 %v967, %v1039
        %v1041 = vpop.f32.mrb[0].mxu0
        %1042 = vdwg.mxu0
        %1043 = vst.msk [vmem:[%s188] sm:$0xff] %vm211, %v1040
        %s1044 = sand.u32 %s115, 1
        %s1045 = scalar_lea.sflag [#allocation3], %s1044
        %s1046 = sand.u32 %s115, 1
        %s1047 = smul.addr %s1046, 8
        %s1048 = scalar_lea.vmem [#allocation2], %s1047
        // Predicated region
        $region37: #{tpu_custom_call.1} parent=35 // pred_check
          %p1049 = pneg %p125
        $region38: #{tpu_custom_call.1} parent=35 // pred_check_branch
          %1051 = sbr.rel (%p1049) target = $region40
        $region39: #{tpu_custom_call.1} parent=35 // pred_region
          %s1053 = ssub.s32 128, 128
          %1054 = vsyncadd %s1045, %s1053
          %s1055 = smul.addr %s18, 128
          %s1056 = scalar_lea.hbm %s4, %s1055
          %s1058 = sshll.u32 %s1048, 4
          %s1059 = int_to_ptr.vmem [resolvable:$true] %s1058
          %1061 = dma.vmem_to_hbm [thread:$0]  %s1059, 128, %s1056, %s1045
        $region40: #{tpu_custom_call.1} parent=35 // pred_fallthru
          _
      $region36: #{tpu_custom_call.1} parent=5 // pred_fallthru
        _
      %p1062 = scmp.le.s32.totalorder 2, %s13
      // Predicated region
      $region41: #{tpu_custom_call.1} parent=5 // pred_check
        %p1063 = pneg %p1062
      $region42: #{tpu_custom_call.1} parent=5 // pred_check_branch
        %1065 = sbr.rel (%p1063) target = $region44
      $region43: #{tpu_custom_call.1} parent=5 // pred_region
        %s1066 = ssub.s32 %s13, 2
        // Predicated region
        $region45: #{tpu_custom_call.1} parent=43 // pred_check
          %p1067 = pneg %p131
        $region46: #{tpu_custom_call.1} parent=43 // pred_check_branch
          %1069 = sbr.rel (%p1067) target = $region48
        $region47: #{tpu_custom_call.1} parent=43 // pred_region
          %s1070 = sand.u32 %s116, 1
          %s1071 = scalar_lea.sflag [#allocation3], %s1070
          %s1072 = sand.u32 %s116, 1
          %s1073 = smul.addr %s1072, 8
          %s1074 = scalar_lea.vmem [#allocation2], %s1073
          %1075 = dma.done %s1071, 128
        $region48: #{tpu_custom_call.1} parent=43 // pred_fallthru
          _
      $region44: #{tpu_custom_call.1} parent=5 // pred_fallthru
        _
    $region6: #{tpu_custom_call.1} parent=1 // loop_footer
      %s17 = sadd.s32 1, %s13
    $region7: #{tpu_custom_call.1} parent=1 // loop_footer_branch
      %12 = sbr.rel target = $region3
    $region8: #{tpu_custom_call.1} parent=1 // loop_exit
      _
    %1076 = vsyncpa [#allocation3], 1
    %s1077 = scalar_lea.sflag [#allocation3], 1
    %1078 = vsyncpa %s1077, 1

</llo_original>
